<compile_context>
chip_gen: v7x
topology: tpu7x:2x2x1
jax: 0.10.0
libtpu: 0.0.40
codegen_flags: <defaults>
</compile_context>

<pallas_src>
import functools

import jax
import jax.numpy as jnp
from jax.experimental import pallas as pl
from jax.experimental.pallas import tpu as pltpu


def _round_up(v, m):
    return ((v + m - 1) // m) * m


# ---------------------------------------------------------------------------
# Fused kernel: all GCN layers + PAD mask for one batch tile.
# ---------------------------------------------------------------------------
def _gcn_fused_kernel(num_layers, compute_dtype, *refs):
    """Ref layout:
        refs[0]              adj    (Bt, Np, Np)    compute_dtype
        refs[1]              x      (Bt, Np, Din)   f32
        refs[2 : 2+L]        W_l    (Din_l, Dout)   compute_dtype (pre-transposed)
        refs[2+L : 2+2L]     b_l    (1, Dout)       f32
        refs[2+2L : 2+3L]    out_l  (Bt, Np, Dout)  f32
        refs[2+3L]           mask   (Bt, Np, 1)     f32
    """
    adj_ref, x_ref = refs[0], refs[1]
    w_refs = refs[2:2 + num_layers]
    b_refs = refs[2 + num_layers:2 + 2 * num_layers]
    out_refs = refs[2 + 2 * num_layers:2 + 3 * num_layers]
    mask_ref = refs[2 + 3 * num_layers]

    adj_c = adj_ref[...]                            # (Bt, Np, Np) compute dtype
    adj_f32 = adj_c.astype(jnp.float32)
    x = x_ref[...]                                  # (Bt, Np, Din) f32
    bt, np_dim, _ = adj_f32.shape

    # denom / PAD mask — computed once while adj is already in VMEM.
    row_kd = jnp.sum(adj_f32, axis=2, keepdims=True)            # (Bt, Np, 1)
    # Column sums as a column vector via a tiny batched MXU mat-vec with a
    # ones column (avoids an in-kernel transpose/relayout).
    ones_col = jnp.ones((bt, np_dim, 1), jnp.float32)
    col_kd = jax.lax.dot_general(
        adj_f32, ones_col,
        dimension_numbers=(((1,), (1,)), ((0,), (0,))),
        preferred_element_type=jnp.float32)                      # (Bt, Np, 1)
    inv_denom = pl.reciprocal(row_kd + 1.0, approx=True)         # EUP, ~free
    mask_ref[...] = jnp.where((row_kd + col_kd) == 0.0, 1.0, 0.0)

    # Layer loop is unrolled in the kernel; h stays on-chip (f32) throughout.
    h = x
    for l in range(num_layers):
        w = w_refs[l][...]                          # (Din_l, Dout) compute dtype
        b = b_refs[l][...]                          # (1, Dout)     f32

        # A @ h   (batched matmul, f32 accumulation)
        ax = jax.lax.dot_general(
            adj_c, h.astype(compute_dtype),
            dimension_numbers=(((2,), (1,)), ((0,), (0,))),
            preferred_element_type=jnp.float32)     # (Bt, Np, Din_l)

        # (A@h) @ W^T + b + h @ W^T + b == (A@h + h) @ W + 2b
        # Shared-weight matmul on the flattened (Bt*Np, Din_l) slab -> big MXU M.
        z = (ax + h).astype(compute_dtype)
        _, _, d_l = z.shape
        hw = jnp.dot(z.reshape(bt * np_dim, d_l), w,
                     preferred_element_type=jnp.float32)         # (Bt*Np, Dout)
        hw = hw.reshape(bt, np_dim, -1) + 2.0 * b                # f32 epilogue

        h = jnp.maximum(hw * inv_denom, 0.0)                     # /denom + ReLU
        out_refs[l][...] = h


# ---------------------------------------------------------------------------
# Wrapper
# ---------------------------------------------------------------------------
def gcn_forward(adj, gcn_inputs, weights, biases, *,
                compute_dtype=jnp.bfloat16, block_b=None):
    """Mirror of GCN.forward.

    Returns (list of B x N x hidden outputs, B x N x 1 bool PAD mask).
    """
    B, N, _ = adj.shape
    d_in = gcn_inputs.shape[-1]
    d_out = weights[0].shape[0]
    L = len(weights)
    itemsize = jnp.dtype(compute_dtype).itemsize

    # Lane/sublane-friendly padded shapes (zero padding is value-preserving
    # for the real rows/cols; padded rows/features are sliced off at the end).
    n_p = _round_up(max(N, 8), 8)
    din_p = _round_up(d_in, 128)
    dout_p = _round_up(d_out, 128)
    dmax_p = max(din_p, dout_p)

    def vmem_est(bb):
        adj_b = bb * n_p * n_p * itemsize
        x_b = bb * n_p * din_p * 4
        outs_b = L * bb * n_p * dout_p * 4
        w_b = (din_p + (L - 1) * dout_p) * dout_p * itemsize + L * dout_p * 4
        tmp_b = 4 * bb * n_p * dmax_p * 4
        return 2 * (adj_b + x_b + outs_b) + w_b + tmp_b   # I/O double-buffered

    # Batch elements per grid step: target >=256 rows in the weight matmul,
    # shrink if the working set would blow the (v7x 64 MiB) VMEM budget.
    if block_b is None:
        block_b = max(1, min(B, pl.cdiv(256, n_p)))
    budget = 48 * 1024 * 1024
    while block_b > 1 and vmem_est(block_b) > budget:
        block_b = max(1, block_b // 2)
    b_p = _round_up(B, block_b)
    vmem_limit = int(min(60 * 2**20, max(32 * 2**20, 2 * vmem_est(block_b))))
    # TODO(synk): for very large N the full (Np, Np) adj block no longer fits
    # VMEM (esp. v7x 64 MiB); would need an inner "arbitrary" grid axis
    # K-tiling the A@h contraction.

    # Pad + lay out inputs. adj is cast to the compute dtype in HBM (0/1 is
    # exact in bf16), halving its HBM traffic; x stays f32.
    adj_p = jnp.zeros((b_p, n_p, n_p), compute_dtype)
    adj_p = adj_p.at[:B, :N, :N].set(adj.astype(compute_dtype))
    x_p = jnp.zeros((b_p, n_p, din_p), jnp.float32)
    x_p = x_p.at[:B, :N, :d_in].set(gcn_inputs.astype(jnp.float32))

    w_p, bias_p = [], []
    for l, (w, b) in enumerate(zip(weights, biases)):
        d_l = din_p if l == 0 else dout_p
        wt = jnp.zeros((d_l, dout_p), compute_dtype)
        wt = wt.at[:w.shape[1], :w.shape[0]].set(w.T.astype(compute_dtype))
        w_p.append(wt)
        bias_p.append(jnp.zeros((1, dout_p), jnp.float32).at[0, :b.shape[0]].set(b))

    in_specs = [
        pl.BlockSpec((block_b, n_p, n_p), lambda i: (i, 0, 0)),
        pl.BlockSpec((block_b, n_p, din_p), lambda i: (i, 0, 0)),
    ]
    for l in range(L):
        d_l = din_p if l == 0 else dout_p
        in_specs.append(pl.BlockSpec((d_l, dout_p), lambda i: (0, 0)))
    for _ in range(L):
        in_specs.append(pl.BlockSpec((1, dout_p), lambda i: (0, 0)))

    out_specs = [pl.BlockSpec((block_b, n_p, dout_p), lambda i: (i, 0, 0))
                 for _ in range(L)]
    out_specs.append(pl.BlockSpec((block_b, n_p, 1), lambda i: (i, 0, 0)))

    out_shape = [jax.ShapeDtypeStruct((b_p, n_p, dout_p), jnp.float32)
                 for _ in range(L)]
    out_shape.append(jax.ShapeDtypeStruct((b_p, n_p, 1), jnp.float32))

    kernel = functools.partial(_gcn_fused_kernel, L, compute_dtype)

    results = pl.pallas_call(
        kernel,
        out_shape=out_shape,
        grid_spec=pltpu.PrefetchScalarGridSpec(
            num_scalar_prefetch=0,
            grid=(b_p // block_b,),
            in_specs=in_specs,
            out_specs=out_specs,
        ),
        compiler_params=pltpu.CompilerParams(
            dimension_semantics=("parallel",),   # batch axis -> both TCs on v7x
            vmem_limit_bytes=vmem_limit,
        ),
    )(adj_p, x_p, *w_p, *bias_p)

    outs = [r[:B, :N, :d_out] for r in results[:L]]
    mask = results[L][:B, :N, :] > 0.5
    return outs, mask


# ---------------------------------------------------------------------------
# Parameter construction (mimics nn.Linear default init scheme)
# ---------------------------------------------------------------------------
def init_gcn_params(key, input_dim, hidden_dim, num_layers):
    weights, biases = [], []
    for layer in range(num_layers):
        d_in = input_dim if layer == 0 else hidden_dim
        key, kw, kb = jax.random.split(key, 3)
        bound = 1.0 / jnp.sqrt(d_in)
        w = jax.random.uniform(kw, (hidden_dim, d_in), jnp.float32, -bound, bound)
        b = jax.random.uniform(kb, (hidden_dim,), jnp.float32, -bound, bound)
        weights.append(w)
        biases.append(b)
    return weights, biases


# ---------------------------------------------------------------------------
# Pure-JAX reference for validation
# ---------------------------------------------------------------------------
def gcn_forward_ref(adj, x, weights, biases):
    denom = adj.sum(2)[..., None] + 1.0
    mask = ((adj.sum(2) + adj.sum(1)) == 0)[..., None]
    outs = []
    h = x
    for w, b in zip(weights, biases):
        ax = jnp.einsum("bij,bjd->bid", adj, h)
        axw = ax @ w.T + b + h @ w.T + b
        h = jax.nn.relu(axw / denom)
        outs.append(h)
    return outs, mask


# ---------------------------------------------------------------------------
if __name__ == "__main__":
    B, N = 2, 8            # batch, num_vertex
    INPUT_DIM, HIDDEN_DIM, NUM_LAYERS = 16, 32, 2

    key = jax.random.PRNGKey(0)
    k_adj, k_x, k_params = jax.random.split(key, 3)

    # Sparse-ish adjacency with some all-zero (PAD) vertices.
    adj = (jax.random.uniform(k_adj, (B, N, N)) > 0.7).astype(jnp.float32)
    adj = adj.at[:, -2:, :].set(0.0).at[:, :, -2:].set(0.0)   # last 2 = PAD
    x = jax.random.normal(k_x, (B, N, INPUT_DIM), jnp.float32)

    weights, biases = init_gcn_params(k_params, INPUT_DIM, HIDDEN_DIM, NUM_LAYERS)

    # Recommended config: bf16 matmuls with f32 accumulate + f32 epilogue.
    outs_bf16, mask = gcn_forward(adj, x, weights, biases,
                                  compute_dtype=jnp.bfloat16)
    outs_bf16 = [jax.block_until_ready(o) for o in outs_bf16]
    mask = jax.block_until_ready(mask)

    # Full-f32 matmul path for a tight correctness check.
    outs_f32, mask_f32 = gcn_forward(adj, x, weights, biases,
                                     compute_dtype=jnp.float32)
    outs_f32 = [jax.block_until_ready(o) for o in outs_f32]
    mask_f32 = jax.block_until_ready(mask_f32)

    ref_outs, ref_mask = gcn_forward_ref(adj, x, weights, biases)
    for o, ro in zip(outs_f32, ref_outs):
        assert o.shape == (B, N, HIDDEN_DIM)
        assert jnp.allclose(o, ro, atol=1e-2, rtol=1e-2)   # approx reciprocal
    for o, ro in zip(outs_bf16, ref_outs):
        assert o.shape == (B, N, HIDDEN_DIM)
        assert jnp.allclose(o, ro, atol=1e-1, rtol=1e-1)   # bf16 matmul numerics
    assert mask.shape == (B, N, 1)
    assert bool(jnp.all(mask == ref_mask))
    assert bool(jnp.all(mask_f32 == ref_mask))

    print("KERNEL_OK")
</pallas_src>

<mosaic_0001>
module attributes {stable_mosaic.version = 11 : i64} {
  func.func @_gcn_fused_kernel(%arg0: i32, %arg1: memref<2x8x8xbf16, #tpu.memory_space<vmem>>, %arg2: memref<2x8x128xf32, #tpu.memory_space<vmem>>, %arg3: memref<128x128xbf16, #tpu.memory_space<vmem>>, %arg4: memref<128x128xbf16, #tpu.memory_space<vmem>>, %arg5: memref<1x128xf32, #tpu.memory_space<vmem>>, %arg6: memref<1x128xf32, #tpu.memory_space<vmem>>, %arg7: memref<2x8x128xf32, #tpu.memory_space<vmem>>, %arg8: memref<2x8x128xf32, #tpu.memory_space<vmem>>, %arg9: memref<2x8x1xf32, #tpu.memory_space<vmem>>) attributes {dimension_semantics = [#tpu.dimension_semantics<parallel>], iteration_bounds = array<i64: 1>, scalar_prefetch = 0 : i64, scratch_operands = 0 : i64, tpu.core_type = #tpu.core_type<tc>, window_params = [{transform_indices = @transform_0, window_bounds = array<i64: 2, 8, 8>}, {transform_indices = @transform_1, window_bounds = array<i64: 2, 8, 128>}, {pipeline_mode = #tpu.pipeline_mode<synchronous>, transform_indices = @transform_2, window_bounds = array<i64: 128, 128>}, {pipeline_mode = #tpu.pipeline_mode<synchronous>, transform_indices = @transform_3, window_bounds = array<i64: 128, 128>}, {pipeline_mode = #tpu.pipeline_mode<synchronous>, transform_indices = @transform_4, window_bounds = array<i64: 1, 128>}, {pipeline_mode = #tpu.pipeline_mode<synchronous>, transform_indices = @transform_5, window_bounds = array<i64: 1, 128>}, {transform_indices = @transform_6, window_bounds = array<i64: 2, 8, 128>}, {transform_indices = @transform_7, window_bounds = array<i64: 2, 8, 128>}, {transform_indices = @transform_8, window_bounds = array<i64: 2, 8, 1>}]} {
    %c0 = arith.constant 0 : index
    %c0_0 = arith.constant 0 : index
    %c0_1 = arith.constant 0 : index
    %0 = vector.load %arg1[%c0, %c0_0, %c0_1] : memref<2x8x8xbf16, #tpu.memory_space<vmem>>, vector<2x8x8xbf16>
    %1 = arith.extf %0 : vector<2x8x8xbf16> to vector<2x8x8xf32>
    %c0_2 = arith.constant 0 : index
    %c0_3 = arith.constant 0 : index
    %c0_4 = arith.constant 0 : index
    %2 = vector.load %arg2[%c0_2, %c0_3, %c0_4] : memref<2x8x128xf32, #tpu.memory_space<vmem>>, vector<2x8x128xf32>
    %cst = arith.constant dense<0.000000e+00> : vector<2x8xf32>
    %3 = vector.multi_reduction <add>, %1, %cst [2] : vector<2x8x8xf32> to vector<2x8xf32>
    %4 = vector.shape_cast %3 : vector<2x8xf32> to vector<2x8x1xf32>
    %cst_5 = arith.constant 1.000000e+00 : f32
    %5 = vector.broadcast %cst_5 : f32 to vector<2x8x1xf32>
    %cst_6 = arith.constant dense<0.000000e+00> : vector<2x8x1xf32>
    %6 = tpu.matmul %1, %5, %cst_6 {dimension_numbers = #tpu.dot_dimension_numbers<[1], [1], [2], [2], [0, 0, 0, 2, 1, 2], [0], [0]>} : vector<2x8x8xf32>, vector<2x8x1xf32>, vector<2x8x1xf32> -> vector<2x8x1xf32>
    %cst_7 = arith.constant 1.000000e+00 : f32
    %7 = vector.broadcast %cst_7 : f32 to vector<2x8x1xf32>
    %8 = arith.addf %4, %7 : vector<2x8x1xf32>
    %9 = tpu.reciprocal %8 {approx = true} : vector<2x8x1xf32> -> vector<2x8x1xf32>
    %10 = arith.addf %4, %6 : vector<2x8x1xf32>
    %cst_8 = arith.constant 0.000000e+00 : f32
    %11 = vector.broadcast %cst_8 : f32 to vector<2x8x1xf32>
    %12 = arith.cmpf oeq, %10, %11 : vector<2x8x1xf32>
    %cst_9 = arith.constant 1.000000e+00 : f32
    %cst_10 = arith.constant 0.000000e+00 : f32
    %13 = vector.broadcast %cst_9 : f32 to vector<2x8x1xf32>
    %14 = vector.broadcast %cst_10 : f32 to vector<2x8x1xf32>
    %15 = arith.select %12, %13, %14 : vector<2x8x1xi1>, vector<2x8x1xf32>
    %c0_11 = arith.constant 0 : index
    %c0_12 = arith.constant 0 : index
    %c0_13 = arith.constant 0 : index
    %16 = vector.load %arg9[%c0_11, %c0_12, %c0_13] : memref<2x8x1xf32, #tpu.memory_space<vmem>>, vector<2x8x1xf32>
    tpu.vector_store %arg9[%c0_11, %c0_12, %c0_13], %15 {strides = array<i32>} : memref<2x8x1xf32, #tpu.memory_space<vmem>>, vector<2x8x1xf32>,
    %c0_14 = arith.constant 0 : index
    %c0_15 = arith.constant 0 : index
    %17 = vector.load %arg3[%c0_14, %c0_15] : memref<128x128xbf16, #tpu.memory_space<vmem>>, vector<128x128xbf16>
    %c0_16 = arith.constant 0 : index
    %c0_17 = arith.constant 0 : index
    %18 = vector.load %arg5[%c0_16, %c0_17] : memref<1x128xf32, #tpu.memory_space<vmem>>, vector<1x128xf32>
    %19 = arith.truncf %2 : vector<2x8x128xf32> to vector<2x8x128xbf16>
    %cst_18 = arith.constant dense<0.000000e+00> : vector<2x8x128xf32>
    %20 = tpu.matmul %0, %19, %cst_18 {dimension_numbers = #tpu.dot_dimension_numbers<[2], [1], [1], [2], [0, 0, 0, 1, 1, 2], [0], [0]>} : vector<2x8x8xbf16>, vector<2x8x128xbf16>, vector<2x8x128xf32> -> vector<2x8x128xf32>
    %21 = arith.addf %20, %2 : vector<2x8x128xf32>
    %22 = arith.truncf %21 : vector<2x8x128xf32> to vector<2x8x128xbf16>
    %23 = vector.shape_cast %22 : vector<2x8x128xbf16> to vector<16x128xbf16>
    %cst_19 = arith.constant dense<0.000000e+00> : vector<16x128xf32>
    %24 = tpu.matmul %23, %17, %cst_19 {dimension_numbers = #tpu.dot_dimension_numbers<[1], [0], [0], [1], [0, 0, 1, 1], [], []>} : vector<16x128xbf16>, vector<128x128xbf16>, vector<16x128xf32> -> vector<16x128xf32>
    %25 = vector.shape_cast %24 : vector<16x128xf32> to vector<2x8x128xf32>
    %cst_20 = arith.constant 2.000000e+00 : f32
    %26 = vector.broadcast %cst_20 : f32 to vector<1x128xf32>
    %27 = arith.mulf %26, %18 : vector<1x128xf32>
    %28 = vector.shape_cast %27 : vector<1x128xf32> to vector<1x1x128xf32>
    %29 = vector.broadcast %28 : vector<1x1x128xf32> to vector<2x8x128xf32>
    %30 = arith.addf %25, %29 : vector<2x8x128xf32>
    %31 = vector.broadcast %9 : vector<2x8x1xf32> to vector<2x8x128xf32>
    %32 = arith.mulf %30, %31 : vector<2x8x128xf32>
    %cst_21 = arith.constant 0.000000e+00 : f32
    %33 = vector.broadcast %cst_21 : f32 to vector<2x8x128xf32>
    %34 = arith.maximumf %32, %33 : vector<2x8x128xf32>
    %c0_22 = arith.constant 0 : index
    %c0_23 = arith.constant 0 : index
    %c0_24 = arith.constant 0 : index
    %35 = vector.load %arg7[%c0_22, %c0_23, %c0_24] : memref<2x8x128xf32, #tpu.memory_space<vmem>>, vector<2x8x128xf32>
    tpu.vector_store %arg7[%c0_22, %c0_23, %c0_24], %34 {strides = array<i32>} : memref<2x8x128xf32, #tpu.memory_space<vmem>>, vector<2x8x128xf32>,
    %c0_25 = arith.constant 0 : index
    %c0_26 = arith.constant 0 : index
    %36 = vector.load %arg4[%c0_25, %c0_26] : memref<128x128xbf16, #tpu.memory_space<vmem>>, vector<128x128xbf16>
    %c0_27 = arith.constant 0 : index
    %c0_28 = arith.constant 0 : index
    %37 = vector.load %arg6[%c0_27, %c0_28] : memref<1x128xf32, #tpu.memory_space<vmem>>, vector<1x128xf32>
    %38 = arith.truncf %34 : vector<2x8x128xf32> to vector<2x8x128xbf16>
    %cst_29 = arith.constant dense<0.000000e+00> : vector<2x8x128xf32>
    %39 = tpu.matmul %0, %38, %cst_29 {dimension_numbers = #tpu.dot_dimension_numbers<[2], [1], [1], [2], [0, 0, 0, 1, 1, 2], [0], [0]>} : vector<2x8x8xbf16>, vector<2x8x128xbf16>, vector<2x8x128xf32> -> vector<2x8x128xf32>
    %40 = arith.addf %39, %34 : vector<2x8x128xf32>
    %41 = arith.truncf %40 : vector<2x8x128xf32> to vector<2x8x128xbf16>
    %42 = vector.shape_cast %41 : vector<2x8x128xbf16> to vector<16x128xbf16>
    %cst_30 = arith.constant dense<0.000000e+00> : vector<16x128xf32>
    %43 = tpu.matmul %42, %36, %cst_30 {dimension_numbers = #tpu.dot_dimension_numbers<[1], [0], [0], [1], [0, 0, 1, 1], [], []>} : vector<16x128xbf16>, vector<128x128xbf16>, vector<16x128xf32> -> vector<16x128xf32>
    %44 = vector.shape_cast %43 : vector<16x128xf32> to vector<2x8x128xf32>
    %cst_31 = arith.constant 2.000000e+00 : f32
    %45 = vector.broadcast %cst_31 : f32 to vector<1x128xf32>
    %46 = arith.mulf %45, %37 : vector<1x128xf32>
    %47 = vector.shape_cast %46 : vector<1x128xf32> to vector<1x1x128xf32>
    %48 = vector.broadcast %47 : vector<1x1x128xf32> to vector<2x8x128xf32>
    %49 = arith.addf %44, %48 : vector<2x8x128xf32>
    %50 = vector.broadcast %9 : vector<2x8x1xf32> to vector<2x8x128xf32>
    %51 = arith.mulf %49, %50 : vector<2x8x128xf32>
    %cst_32 = arith.constant 0.000000e+00 : f32
    %52 = vector.broadcast %cst_32 : f32 to vector<2x8x128xf32>
    %53 = arith.maximumf %51, %52 : vector<2x8x128xf32>
    %c0_33 = arith.constant 0 : index
    %c0_34 = arith.constant 0 : index
    %c0_35 = arith.constant 0 : index
    %54 = vector.load %arg8[%c0_33, %c0_34, %c0_35] : memref<2x8x128xf32, #tpu.memory_space<vmem>>, vector<2x8x128xf32>
    tpu.vector_store %arg8[%c0_33, %c0_34, %c0_35], %53 {strides = array<i32>} : memref<2x8x128xf32, #tpu.memory_space<vmem>>, vector<2x8x128xf32>,
    return
  }
  func.func @transform_0(%arg0: i32) -> (i32, i32, i32) {
    %c0_i32 = arith.constant 0 : i32
    %c0_i32_0 = arith.constant 0 : i32
    %c0_i32_1 = arith.constant 0 : i32
    return %arg0, %c0_i32, %c0_i32_0 : i32, i32, i32
  }
  func.func @transform_1(%arg0: i32) -> (i32, i32, i32) {
    %c0_i32 = arith.constant 0 : i32
    %c0_i32_0 = arith.constant 0 : i32
    %c0_i32_1 = arith.constant 0 : i32
    return %arg0, %c0_i32, %c0_i32_0 : i32, i32, i32
  }
  func.func @transform_2(%arg0: i32) -> (i32, i32) {
    %c0_i32 = arith.constant 0 : i32
    %c0_i32_0 = arith.constant 0 : i32
    %c0_i32_1 = arith.constant 0 : i32
    return %c0_i32, %c0_i32_0 : i32, i32
  }
  func.func @transform_3(%arg0: i32) -> (i32, i32) {
    %c0_i32 = arith.constant 0 : i32
    %c0_i32_0 = arith.constant 0 : i32
    %c0_i32_1 = arith.constant 0 : i32
    return %c0_i32, %c0_i32_0 : i32, i32
  }
  func.func @transform_4(%arg0: i32) -> (i32, i32) {
    %c0_i32 = arith.constant 0 : i32
    %c0_i32_0 = arith.constant 0 : i32
    %c0_i32_1 = arith.constant 0 : i32
    return %c0_i32, %c0_i32_0 : i32, i32
  }
  func.func @transform_5(%arg0: i32) -> (i32, i32) {
    %c0_i32 = arith.constant 0 : i32
    %c0_i32_0 = arith.constant 0 : i32
    %c0_i32_1 = arith.constant 0 : i32
    return %c0_i32, %c0_i32_0 : i32, i32
  }
  func.func @transform_6(%arg0: i32) -> (i32, i32, i32) {
    %c0_i32 = arith.constant 0 : i32
    %c0_i32_0 = arith.constant 0 : i32
    %c0_i32_1 = arith.constant 0 : i32
    return %arg0, %c0_i32, %c0_i32_0 : i32, i32, i32
  }
  func.func @transform_7(%arg0: i32) -> (i32, i32, i32) {
    %c0_i32 = arith.constant 0 : i32
    %c0_i32_0 = arith.constant 0 : i32
    %c0_i32_1 = arith.constant 0 : i32
    return %arg0, %c0_i32, %c0_i32_0 : i32, i32, i32
  }
  func.func @transform_8(%arg0: i32) -> (i32, i32, i32) {
    %c0_i32 = arith.constant 0 : i32
    %c0_i32_0 = arith.constant 0 : i32
    %c0_i32_1 = arith.constant 0 : i32
    return %arg0, %c0_i32, %c0_i32_0 : i32, i32, i32
  }
}

</mosaic_0001>

<llo_original>
// kernel: tpu_custom_call.1
$region0: #{tpu_custom_call.1}
  #allocation0 [shape = 'u32[]', space=smem, size = 0x4, offset = 0x4, fixed_abs, tag = 'smem constant byte address 0x4 - core index']
  #allocation1 [shape = 'u32[144,128]{1,0:T(1,128)}', space=vmem, size = 0x12000, scoped, tag = 'internal scratch']
  %s0 = inlined_call_operand.hbm [shape: bf16[2,8,8], index: 0, kind: input, shape index: {}]
  %s1 = inlined_call_operand.hbm [shape: f32[2,8,128], index: 1, kind: input, shape index: {}]
  %s2 = inlined_call_operand.hbm [shape: bf16[128,128], index: 2, kind: input, shape index: {}]
  %s3 = inlined_call_operand.hbm [shape: bf16[128,128], index: 3, kind: input, shape index: {}]
  %s4 = inlined_call_operand.vmem [shape: f32[1,128], index: 4, kind: input, shape index: {}]
  %s5 = inlined_call_operand.vmem [shape: f32[1,128], index: 5, kind: input, shape index: {}]
  %s6 = inlined_call_operand.hbm [shape: f32[2,8,128], index: 6, kind: output, shape index: {0}]
  %s7 = inlined_call_operand.hbm [shape: f32[2,8,128], index: 7, kind: output, shape index: {1}]
  %s8 = inlined_call_operand.vmem [shape: f32[2,8,1], index: 8, kind: output, shape index: {2}]
  %9 = xla_tuple %s6, %s7, %s8
  %s10 = sld [smem:[#allocation0]]
  $region66: #{tpu_custom_call.1} parent=0
    _
  %s12 = ssub.s32 1, %s10
  %s13 = scalar_select 0, %s12, %s10
  $region1: #{tpu_custom_call.1} parent=0
    #allocation2 [shape = 'u8[4096]{0}', space=vmem, size = 0x1000, scoped, tag = 'input window, operand 0, single buffered']
    #allocation3 [shape = 's32[1]{0}', space=sflag, size = 0x4, scoped, tag = 'scoped memory for tpu_custom_call.1']
    #allocation4 [shape = 's32[1]{0}', space=sflag, size = 0x4, scoped, tag = 'scoped memory for tpu_custom_call.1']
    #allocation5 [shape = 'u8[8192]{0}', space=vmem, size = 0x2000, scoped, tag = 'input window, operand 1, single buffered']
    #allocation6 [shape = 's32[1]{0}', space=sflag, size = 0x4, scoped, tag = 'scoped memory for tpu_custom_call.1']
    #allocation7 [shape = 'u8[32768]{0}', space=vmem, size = 0x8000, scoped, tag = 'input window, operand 2, single buffered']
    #allocation8 [shape = 'u8[32768]{0}', space=vmem, size = 0x8000, scoped, tag = 'input window, operand 3, single buffered']
    #allocation9 [shape = 's32[1]{0}', space=sflag, size = 0x4, scoped, tag = 'scoped memory for tpu_custom_call.1']
    #allocation10 [shape = 'u8[8192]{0}', space=vmem, size = 0x2000, scoped, tag = 'output window, operand 0, single buffered']
    #allocation11 [shape = 'u8[8192]{0}', space=vmem, size = 0x2000, scoped, tag = 'output window, operand 1, single buffered']
    #allocation12 [shape = 's32[1]{0}', space=sflag, size = 0x4, scoped, tag = 'scoped memory for tpu_custom_call.1']
    %14 = vsyncpa [#allocation3], 0
    %15 = vsyncpa [#allocation6], 0
    %16 = vsyncpa [#allocation9], 0
    %17 = vsyncpa [#allocation4], 0
    %18 = vsyncpa [#allocation12], 0
    // Predicated region
    $region2: #{tpu_custom_call.1} parent=1 // pred_check
      _
    $region3: #{tpu_custom_call.1} parent=1 // pred_check_branch
      %20 = sbr.rel (0) target = $region5
    $region4: #{tpu_custom_call.1} parent=1 // pred_region
      %s22 = ssub.s32 128, 128
      %23 = vsyncadd [#allocation3], %s22
      %s24 = sshll.u32 [#allocation2], 4
      %s25 = int_to_ptr.vmem [resolvable:$true] %s24
      %30 = dma.hbm_to_vmem [thread:$0]  %s0, 128, %s25, [#allocation3], 64, 64, 4
    $region5: #{tpu_custom_call.1} parent=1 // pred_fallthru
      _
    // Predicated region
    $region6: #{tpu_custom_call.1} parent=1 // pred_check
      _
    $region7: #{tpu_custom_call.1} parent=1 // pred_check_branch
      %32 = sbr.rel (0) target = $region9
    $region8: #{tpu_custom_call.1} parent=1 // pred_region
      %s34 = ssub.s32 256, 256
      %35 = vsyncadd [#allocation6], %s34
      %s36 = sshll.u32 [#allocation5], 4
      %s37 = int_to_ptr.vmem [resolvable:$true] %s36
      %42 = dma.hbm_to_vmem [thread:$0]  %s1, 256, %s37, [#allocation6], 128, 128, 8
    $region9: #{tpu_custom_call.1} parent=1 // pred_fallthru
      _
    // Predicated region
    $region10: #{tpu_custom_call.1} parent=1 // pred_check
      _
    $region11: #{tpu_custom_call.1} parent=1 // pred_check_branch
      %44 = sbr.rel (0) target = $region13
    $region12: #{tpu_custom_call.1} parent=1 // pred_region
      %s46 = ssub.s32 1024, 1024
      %47 = vsyncadd [#allocation6], %s46
      %s48 = sshll.u32 [#allocation7], 4
      %s49 = int_to_ptr.vmem [resolvable:$true] %s48
      %54 = dma.hbm_to_vmem [thread:$0]  %s2, 1024, %s49, [#allocation6], 64, 64, 4
    $region13: #{tpu_custom_call.1} parent=1 // pred_fallthru
      _
    // Predicated region
    $region14: #{tpu_custom_call.1} parent=1 // pred_check
      _
    $region15: #{tpu_custom_call.1} parent=1 // pred_check_branch
      %56 = sbr.rel (0) target = $region17
    $region16: #{tpu_custom_call.1} parent=1 // pred_region
      %s58 = ssub.s32 1024, 1024
      %59 = vsyncadd [#allocation9], %s58
      %s60 = sshll.u32 [#allocation8], 4
      %s61 = int_to_ptr.vmem [resolvable:$true] %s60
      %66 = dma.hbm_to_vmem [thread:$0]  %s3, 1024, %s61, [#allocation9], 64, 64, 4
    $region17: #{tpu_custom_call.1} parent=1 // pred_fallthru
      _
    // Predicated region
    $region18: #{tpu_custom_call.1} parent=1 // pred_check
      _
    $region19: #{tpu_custom_call.1} parent=1 // pred_check_branch
      %68 = sbr.rel (0) target = $region21
    $region20: #{tpu_custom_call.1} parent=1 // pred_region
      _
    $region21: #{tpu_custom_call.1} parent=1 // pred_fallthru
      _
    // Predicated region
    $region22: #{tpu_custom_call.1} parent=1 // pred_check
      _
    $region23: #{tpu_custom_call.1} parent=1 // pred_check_branch
      %70 = sbr.rel (0) target = $region25
    $region24: #{tpu_custom_call.1} parent=1 // pred_region
      _
    $region25: #{tpu_custom_call.1} parent=1 // pred_fallthru
      _
    // Predicated region
    $region26: #{tpu_custom_call.1} parent=1 // pred_check
      _
    $region27: #{tpu_custom_call.1} parent=1 // pred_check_branch
      %72 = sbr.rel (0) target = $region29
    $region28: #{tpu_custom_call.1} parent=1 // pred_region
      %73 = dma.done [#allocation3], 128
    $region29: #{tpu_custom_call.1} parent=1 // pred_fallthru
      _
    // Predicated region
    $region30: #{tpu_custom_call.1} parent=1 // pred_check
      _
    $region31: #{tpu_custom_call.1} parent=1 // pred_check_branch
      %75 = sbr.rel (0) target = $region33
    $region32: #{tpu_custom_call.1} parent=1 // pred_region
      %76 = dma.done [#allocation6], 256
    $region33: #{tpu_custom_call.1} parent=1 // pred_fallthru
      _
    // Predicated region
    $region34: #{tpu_custom_call.1} parent=1 // pred_check
      _
    $region35: #{tpu_custom_call.1} parent=1 // pred_check_branch
      %78 = sbr.rel (0) target = $region37
    $region36: #{tpu_custom_call.1} parent=1 // pred_region
      %79 = dma.done [#allocation6], 1024
    $region37: #{tpu_custom_call.1} parent=1 // pred_fallthru
      _
    // Predicated region
    $region38: #{tpu_custom_call.1} parent=1 // pred_check
      _
    $region39: #{tpu_custom_call.1} parent=1 // pred_check_branch
      %81 = sbr.rel (0) target = $region41
    $region40: #{tpu_custom_call.1} parent=1 // pred_region
      %82 = dma.done [#allocation9], 1024
    $region41: #{tpu_custom_call.1} parent=1 // pred_fallthru
      _
    %v84 = vld [vmem:[#allocation2] sm:$0xf]
    %v85 = vld [vmem:[#allocation2 + $0x4] sm:$0xf]
    %v86 = vunpack.c.l.bf16 %v84
    %v87 = vunpack.c.l.bf16 %v85
    %v88 = vld [vmem:[#allocation5] sm:$0xff]
    %v89 = vld [vmem:[#allocation5 + $0x8] sm:$0xff]
    %vm90 = vcmask 64512
    %v91 = vsel %vm90, %v86, 0.0
    %92 = vadd.xlane.f32.xlu0 %v91
    %v93 = vpop.xlane.xlu0 %92
    %v94 = vsel %vm90, %v87, 0.0
    %95 = vadd.xlane.f32.xlu0 %v94
    %v96 = vpop.xlane.xlu0 %95
    %97 = vxpose.xlu0.b32.start [1/16] %v86, 128
    %98 = vxpose.xlu0.b32.cont [2/16] 0.0, 128
    %99 = vxpose.xlu0.b32.cont [3/16] 0.0, 128
    %100 = vxpose.xlu0.b32.cont [4/16] 0.0, 128
    %101 = vxpose.xlu0.b32.cont [5/16] 0.0, 128
    %102 = vxpose.xlu0.b32.cont [6/16] 0.0, 128
    %103 = vxpose.xlu0.b32.cont [7/16] 0.0, 128
    %104 = vxpose.xlu0.b32.cont [8/16] 0.0, 128
    %105 = vxpose.xlu0.b32.cont [9/16] 0.0, 128
    %106 = vxpose.xlu0.b32.cont [10/16] 0.0, 128
    %107 = vxpose.xlu0.b32.cont [11/16] 0.0, 128
    %108 = vxpose.xlu0.b32.cont [12/16] 0.0, 128
    %109 = vxpose.xlu0.b32.cont [13/16] 0.0, 128
    %110 = vxpose.xlu0.b32.cont [14/16] 0.0, 128
    %111 = vxpose.xlu0.b32.cont [15/16] 0.0, 128
    %112 = vxpose.xlu0.b32.end [16/16] 0.0, 128
    %v113 = vpop.trf.xlu0
    %v114 = vpop.trf.xlu0
    %v115 = vpop.trf.xlu0
    %v116 = vpop.trf.xlu0
    %v117 = vpop.trf.xlu0
    %v118 = vpop.trf.xlu0
    %v119 = vpop.trf.xlu0
    %v120 = vpop.trf.xlu0
    %v121 = vpop.trf.xlu0
    %v122 = vpop.trf.xlu0
    %v123 = vpop.trf.xlu0
    %v124 = vpop.trf.xlu0
    %v125 = vpop.trf.xlu0
    %v126 = vpop.trf.xlu0
    %v127 = vpop.trf.xlu0
    %v128 = vpop.trf.xlu0
    %v130 = vsel %vm90, %v113, 0
    %132 = vmatprep.subr.mxu0 0.0
    %133 = vmatpush1.msra.mxu0 1.0
    %134 = vmatprep.subr.mxu0 0.0
    %135 = vmatpush1.msra.mxu0 0.0
    %136 = vmatprep.subr.mxu0 0.0
    %137 = vmatpush1.msra.mxu0 0.0
    %138 = vmatprep.subr.mxu0 0.0
    %139 = vmatpush1.msra.mxu0 0.0
    %140 = vmatprep.subr.mxu0 0.0
    %141 = vmatpush1.msra.mxu0 0.0
    %142 = vmatprep.subr.mxu0 0.0
    %143 = vmatpush1.msra.mxu0 0.0
    %144 = vmatprep.subr.mxu0 0.0
    %145 = vmatpush1.msra.mxu0 0.0
    %146 = vmatprep.subr.mxu0 0.0
    %147 = vmatpush1.msra.mxu0 0.0
    %148 = vmatprep.subr.mxu0 0.0
    %149 = vmatpush1.msra.mxu0 0.0
    %150 = vmatprep.subr.mxu0 0.0
    %151 = vmatpush1.msra.mxu0 0.0
    %152 = vmatprep.subr.mxu0 0.0
    %153 = vmatpush1.msra.mxu0 0.0
    %154 = vmatprep.subr.mxu0 0.0
    %155 = vmatpush1.msra.mxu0 0.0
    %156 = vmatprep.subr.mxu0 0.0
    %157 = vmatpush1.msra.mxu0 0.0
    %158 = vmatprep.subr.mxu0 0.0
    %159 = vmatpush1.msra.mxu0 0.0
    %160 = vmatprep.subr.mxu0 0.0
    %161 = vmatpush1.msra.mxu0 0.0
    %162 = vmatprep.subr.mxu0 0.0
    %163 = vmatpush1.msra.mxu0 0.0
    %164 = vmatprep.subr.mxu0 0.0
    %165 = vmatpush1.msra.mxu0 0.0
    %166 = vmatprep.subr.mxu0 0.0
    %167 = vmatpush1.msra.mxu0 0.0
    %168 = vmatprep.subr.mxu0 0.0
    %169 = vmatpush1.msra.mxu0 0.0
    %170 = vmatprep.subr.mxu0 0.0
    %171 = vmatpush1.msra.mxu0 0.0
    %172 = vmatprep.subr.mxu0 0.0
    %173 = vmatpush1.msra.mxu0 0.0
    %174 = vmatprep.subr.mxu0 0.0
    %175 = vmatpush1.msra.mxu0 0.0
    %176 = vmatprep.subr.mxu0 0.0
    %177 = vmatpush1.msra.mxu0 0.0
    %178 = vmatprep.subr.mxu0 0.0
    %179 = vmatpush1.msra.mxu0 0.0
    %180 = vmatprep.subr.mxu0 0.0
    %181 = vmatpush1.msra.mxu0 0.0
    %182 = vmatprep.subr.mxu0 0.0
    %183 = vmatpush1.msra.mxu0 0.0
    %184 = vmatprep.subr.mxu0 0.0
    %185 = vmatpush1.msra.mxu0 0.0
    %186 = vmatprep.subr.mxu0 0.0
    %187 = vmatpush1.msra.mxu0 0.0
    %188 = vmatprep.subr.mxu0 0.0
    %189 = vmatpush1.msra.mxu0 0.0
    %190 = vmatprep.subr.mxu0 0.0
    %191 = vmatpush1.msra.mxu0 0.0
    %192 = vmatprep.subr.mxu0 0.0
    %193 = vmatpush1.msra.mxu0 0.0
    %194 = vmatprep.subr.mxu0 0.0
    %195 = vmatpush1.msra.mxu0 0.0
    %196 = vmatprep.mubr.f32.mxu0 0.0
    %197 = vmatmul.mubr.f32.gmra.mrb[0].mxu0 %v130
    %v198 = vpop.f32.mrb[0].mxu0
    %v199 = vadd.f32 0.0, %v198
    %v200 = vpop.f32.mrb[0].mxu0
    %201 = vdwg.mxu0
    %202 = vxpose.xlu0.b32.start [1/16] %v87, 128
    %203 = vxpose.xlu0.b32.cont [2/16] 0.0, 128
    %204 = vxpose.xlu0.b32.cont [3/16] 0.0, 128
    %205 = vxpose.xlu0.b32.cont [4/16] 0.0, 128
    %206 = vxpose.xlu0.b32.cont [5/16] 0.0, 128
    %207 = vxpose.xlu0.b32.cont [6/16] 0.0, 128
    %208 = vxpose.xlu0.b32.cont [7/16] 0.0, 128
    %209 = vxpose.xlu0.b32.cont [8/16] 0.0, 128
    %210 = vxpose.xlu0.b32.cont [9/16] 0.0, 128
    %211 = vxpose.xlu0.b32.cont [10/16] 0.0, 128
    %212 = vxpose.xlu0.b32.cont [11/16] 0.0, 128
    %213 = vxpose.xlu0.b32.cont [12/16] 0.0, 128
    %214 = vxpose.xlu0.b32.cont [13/16] 0.0, 128
    %215 = vxpose.xlu0.b32.cont [14/16] 0.0, 128
    %216 = vxpose.xlu0.b32.cont [15/16] 0.0, 128
    %217 = vxpose.xlu0.b32.end [16/16] 0.0, 128
    %v218 = vpop.trf.xlu0
    %v219 = vpop.trf.xlu0
    %v220 = vpop.trf.xlu0
    %v221 = vpop.trf.xlu0
    %v222 = vpop.trf.xlu0
    %v223 = vpop.trf.xlu0
    %v224 = vpop.trf.xlu0
    %v225 = vpop.trf.xlu0
    %v226 = vpop.trf.xlu0
    %v227 = vpop.trf.xlu0
    %v228 = vpop.trf.xlu0
    %v229 = vpop.trf.xlu0
    %v230 = vpop.trf.xlu0
    %v231 = vpop.trf.xlu0
    %v232 = vpop.trf.xlu0
    %v233 = vpop.trf.xlu0
    %v235 = vsel %vm90, %v218, 0
    %237 = vmatprep.subr.mxu0 0.0
    %238 = vmatpush1.msra.mxu0 1.0
    %239 = vmatprep.subr.mxu0 0.0
    %240 = vmatpush1.msra.mxu0 0.0
    %241 = vmatprep.subr.mxu0 0.0
    %242 = vmatpush1.msra.mxu0 0.0
    %243 = vmatprep.subr.mxu0 0.0
    %244 = vmatpush1.msra.mxu0 0.0
    %245 = vmatprep.subr.mxu0 0.0
    %246 = vmatpush1.msra.mxu0 0.0
    %247 = vmatprep.subr.mxu0 0.0
    %248 = vmatpush1.msra.mxu0 0.0
    %249 = vmatprep.subr.mxu0 0.0
    %250 = vmatpush1.msra.mxu0 0.0
    %251 = vmatprep.subr.mxu0 0.0
    %252 = vmatpush1.msra.mxu0 0.0
    %253 = vmatprep.subr.mxu0 0.0
    %254 = vmatpush1.msra.mxu0 0.0
    %255 = vmatprep.subr.mxu0 0.0
    %256 = vmatpush1.msra.mxu0 0.0
    %257 = vmatprep.subr.mxu0 0.0
    %258 = vmatpush1.msra.mxu0 0.0
    %259 = vmatprep.subr.mxu0 0.0
    %260 = vmatpush1.msra.mxu0 0.0
    %261 = vmatprep.subr.mxu0 0.0
    %262 = vmatpush1.msra.mxu0 0.0
    %263 = vmatprep.subr.mxu0 0.0
    %264 = vmatpush1.msra.mxu0 0.0
    %265 = vmatprep.subr.mxu0 0.0
    %266 = vmatpush1.msra.mxu0 0.0
    %267 = vmatprep.subr.mxu0 0.0
    %268 = vmatpush1.msra.mxu0 0.0
    %269 = vmatprep.subr.mxu0 0.0
    %270 = vmatpush1.msra.mxu0 0.0
    %271 = vmatprep.subr.mxu0 0.0
    %272 = vmatpush1.msra.mxu0 0.0
    %273 = vmatprep.subr.mxu0 0.0
    %274 = vmatpush1.msra.mxu0 0.0
    %275 = vmatprep.subr.mxu0 0.0
    %276 = vmatpush1.msra.mxu0 0.0
    %277 = vmatprep.subr.mxu0 0.0
    %278 = vmatpush1.msra.mxu0 0.0
    %279 = vmatprep.subr.mxu0 0.0
    %280 = vmatpush1.msra.mxu0 0.0
    %281 = vmatprep.subr.mxu0 0.0
    %282 = vmatpush1.msra.mxu0 0.0
    %283 = vmatprep.subr.mxu0 0.0
    %284 = vmatpush1.msra.mxu0 0.0
    %285 = vmatprep.subr.mxu0 0.0
    %286 = vmatpush1.msra.mxu0 0.0
    %287 = vmatprep.subr.mxu0 0.0
    %288 = vmatpush1.msra.mxu0 0.0
    %289 = vmatprep.subr.mxu0 0.0
    %290 = vmatpush1.msra.mxu0 0.0
    %291 = vmatprep.subr.mxu0 0.0
    %292 = vmatpush1.msra.mxu0 0.0
    %293 = vmatprep.subr.mxu0 0.0
    %294 = vmatpush1.msra.mxu0 0.0
    %295 = vmatprep.subr.mxu0 0.0
    %296 = vmatpush1.msra.mxu0 0.0
    %297 = vmatprep.subr.mxu0 0.0
    %298 = vmatpush1.msra.mxu0 0.0
    %299 = vmatprep.subr.mxu0 0.0
    %300 = vmatpush1.msra.mxu0 0.0
    %301 = vmatprep.mubr.f32.mxu0 0.0
    %302 = vmatmul.mubr.f32.gmra.mrb[0].mxu0 %v235
    %v303 = vpop.f32.mrb[0].mxu0
    %v304 = vadd.f32 0.0, %v303
    %v305 = vpop.f32.mrb[0].mxu0
    %306 = vdwg.mxu0
    %v307 = vadd.f32 %v93, 1.0
    %v308 = vadd.f32 %v96, 1.0
    %v309 = vrcp.pop %v307
    %v310 = vrcp.pop %v308
    %v311 = vadd.f32 %v93, %v199
    %v312 = vadd.f32 %v96, %v304
    %vm313 = vcmp.eq.f32.partialorder %v311, 0.0
    %vm314 = vcmp.eq.f32.partialorder %v312, 0.0
    %v315 = vsel %vm313, 1.0, 0.0
    %v316 = vsel %vm314, 1.0, 0.0
    %vm317 = vcmask 7168
    %318 = vst.msk [vmem:[%s8] sm:$0xff] %vm317, %v315
    %319 = vst.msk [vmem:[%s8 + $0x8] sm:$0xff] %vm317, %v316
    %v320 = vld [vmem:[#allocation7] sm:$0xf]
    %v321 = vld [vmem:[#allocation7 + $0x4] sm:$0xf]
    %v322 = vld [vmem:[#allocation7 + $0x8] sm:$0xf]
    %v323 = vld [vmem:[#allocation7 + $0xc] sm:$0xf]
    %v324 = vld [vmem:[#allocation7 + $0x10] sm:$0xf]
    %v325 = vld [vmem:[#allocation7 + $0x14] sm:$0xf]
    %v326 = vld [vmem:[#allocation7 + $0x18] sm:$0xf]
    %v327 = vld [vmem:[#allocation7 + $0x1c] sm:$0xf]
    %v328 = vld [vmem:[#allocation7 + $0x20] sm:$0xf]
    %v329 = vld [vmem:[#allocation7 + $0x24] sm:$0xf]
    %v330 = vld [vmem:[#allocation7 + $0x28] sm:$0xf]
    %v331 = vld [vmem:[#allocation7 + $0x2c] sm:$0xf]
    %v332 = vld [vmem:[#allocation7 + $0x30] sm:$0xf]
    %v333 = vld [vmem:[#allocation7 + $0x34] sm:$0xf]
    %v334 = vld [vmem:[#allocation7 + $0x38] sm:$0xf]
    %v335 = vld [vmem:[#allocation7 + $0x3c] sm:$0xf]
    %v336 = vld [vmem:[%s4] sm:$0x1]
    %v337 = vpack.c.bf16 %v88, %v88
    %v338 = vpack.c.bf16 %v89, %v89
    %v340 = vsel %vm90, %v84, 0
    %vm342 = vcmask 1043456
    %v344 = vsel %vm342, %v337, 0
    %346 = vmatprep.subr.bf16.mxu0 0
    %347 = vmatpush1.bf16.msra.mxu0 %v344
    %348 = vmatprep.subr.bf16.mxu0 0
    %349 = vmatpush1.bf16.msra.mxu0 0
    %350 = vmatprep.subr.bf16.mxu0 0
    %351 = vmatpush1.bf16.msra.mxu0 0
    %352 = vmatprep.subr.bf16.mxu0 0
    %353 = vmatpush1.bf16.msra.mxu0 0
    %354 = vmatprep.subr.bf16.mxu0 0
    %355 = vmatpush1.bf16.msra.mxu0 0
    %356 = vmatprep.subr.bf16.mxu0 0
    %357 = vmatpush1.bf16.msra.mxu0 0
    %358 = vmatprep.subr.bf16.mxu0 0
    %359 = vmatpush1.bf16.msra.mxu0 0
    %360 = vmatprep.subr.bf16.mxu0 0
    %361 = vmatpush1.bf16.msra.mxu0 0
    %362 = vmatprep.subr.bf16.mxu0 0
    %363 = vmatpush1.bf16.msra.mxu0 0
    %364 = vmatprep.subr.bf16.mxu0 0
    %365 = vmatpush1.bf16.msra.mxu0 0
    %366 = vmatprep.subr.bf16.mxu0 0
    %367 = vmatpush1.bf16.msra.mxu0 0
    %368 = vmatprep.subr.bf16.mxu0 0
    %369 = vmatpush1.bf16.msra.mxu0 0
    %370 = vmatprep.subr.bf16.mxu0 0
    %371 = vmatpush1.bf16.msra.mxu0 0
    %372 = vmatprep.subr.bf16.mxu0 0
    %373 = vmatpush1.bf16.msra.mxu0 0
    %374 = vmatprep.subr.bf16.mxu0 0
    %375 = vmatpush1.bf16.msra.mxu0 0
    %376 = vmatprep.subr.bf16.mxu0 0
    %377 = vmatpush1.bf16.msra.mxu0 0
    %378 = vmatprep.mubr.bf16.mxu0 0
    %379 = vmatmul.mubr.bf16.gmra.mrb[0].mxu0 %v340
    %v380 = vpop.f32.mrb[0].mxu0
    %v381 = vadd.f32 %v88, %v380
    %v382 = vpop.f32.mrb[0].mxu0
    %v383 = vpop.f32.mrb[0].mxu0
    %v384 = vpop.f32.mrb[0].mxu0
    %385 = vdwg.mxu0
    %v387 = vsel %vm90, %v85, 0
    %v390 = vsel %vm342, %v338, 0
    %392 = vmatprep.subr.bf16.mxu0 0
    %393 = vmatpush1.bf16.msra.mxu0 %v390
    %394 = vmatprep.subr.bf16.mxu0 0
    %395 = vmatpush1.bf16.msra.mxu0 0
    %396 = vmatprep.subr.bf16.mxu0 0
    %397 = vmatpush1.bf16.msra.mxu0 0
    %398 = vmatprep.subr.bf16.mxu0 0
    %399 = vmatpush1.bf16.msra.mxu0 0
    %400 = vmatprep.subr.bf16.mxu0 0
    %401 = vmatpush1.bf16.msra.mxu0 0
    %402 = vmatprep.subr.bf16.mxu0 0
    %403 = vmatpush1.bf16.msra.mxu0 0
    %404 = vmatprep.subr.bf16.mxu0 0
    %405 = vmatpush1.bf16.msra.mxu0 0
    %406 = vmatprep.subr.bf16.mxu0 0
    %407 = vmatpush1.bf16.msra.mxu0 0
    %408 = vmatprep.subr.bf16.mxu0 0
    %409 = vmatpush1.bf16.msra.mxu0 0
    %410 = vmatprep.subr.bf16.mxu0 0
    %411 = vmatpush1.bf16.msra.mxu0 0
    %412 = vmatprep.subr.bf16.mxu0 0
    %413 = vmatpush1.bf16.msra.mxu0 0
    %414 = vmatprep.subr.bf16.mxu0 0
    %415 = vmatpush1.bf16.msra.mxu0 0
    %416 = vmatprep.subr.bf16.mxu0 0
    %417 = vmatpush1.bf16.msra.mxu0 0
    %418 = vmatprep.subr.bf16.mxu0 0
    %419 = vmatpush1.bf16.msra.mxu0 0
    %420 = vmatprep.subr.bf16.mxu0 0
    %421 = vmatpush1.bf16.msra.mxu0 0
    %422 = vmatprep.subr.bf16.mxu0 0
    %423 = vmatpush1.bf16.msra.mxu0 0
    %424 = vmatprep.mubr.bf16.mxu0 0
    %425 = vmatmul.mubr.bf16.gmra.mrb[0].mxu0 %v387
    %v426 = vpop.f32.mrb[0].mxu0
    %v427 = vadd.f32 %v89, %v426
    %v428 = vpop.f32.mrb[0].mxu0
    %v429 = vpop.f32.mrb[0].mxu0
    %v430 = vpop.f32.mrb[0].mxu0
    %431 = vdwg.mxu0
    %v432 = vpack.c.bf16 %v381, %v381
    %v433 = vpack.c.bf16 %v427, %v427
    %v436 = vunpack.c.l.b16 %v432
    %v437 = vunpack.c.l.b16 %v433
    %v438 = vpack.c.b16 %v437, %v436
    %v456 = vunpack.c.l.b16 %v320
    %v457 = vunpack.c.l.b16 %v321
    %v458 = vunpack.c.l.b16 %v322
    %v459 = vunpack.c.l.b16 %v323
    %v460 = vunpack.c.l.b16 %v324
    %v461 = vunpack.c.l.b16 %v325
    %v462 = vunpack.c.l.b16 %v326
    %v463 = vunpack.c.l.b16 %v327
    %v464 = vunpack.c.l.b16 %v328
    %v465 = vunpack.c.l.b16 %v329
    %v466 = vunpack.c.l.b16 %v330
    %v467 = vunpack.c.l.b16 %v331
    %v468 = vunpack.c.l.b16 %v332
    %v469 = vunpack.c.l.b16 %v333
    %v470 = vunpack.c.l.b16 %v334
    %v471 = vunpack.c.l.b16 %v335
    %v472 = vpack.c.b16 %v457, %v456
    %v473 = vpack.c.b16 %v459, %v458
    %v474 = vpack.c.b16 %v461, %v460
    %v475 = vpack.c.b16 %v463, %v462
    %v476 = vpack.c.b16 %v465, %v464
    %v477 = vpack.c.b16 %v467, %v466
    %v478 = vpack.c.b16 %v469, %v468
    %v479 = vpack.c.b16 %v471, %v470
    %488 = vmatprep.subr.bf16.mxu0 0
    %489 = vmatpush1.bf16.msra.mxu0 %v472
    %490 = vmatprep.subr.bf16.mxu0 0
    %491 = vmatpush1.bf16.msra.mxu0 %v473
    %492 = vmatprep.subr.bf16.mxu0 0
    %493 = vmatpush1.bf16.msra.mxu0 %v474
    %494 = vmatprep.subr.bf16.mxu0 0
    %495 = vmatpush1.bf16.msra.mxu0 %v475
    %496 = vmatprep.subr.bf16.mxu0 0
    %497 = vmatpush1.bf16.msra.mxu0 %v476
    %498 = vmatprep.subr.bf16.mxu0 0
    %499 = vmatpush1.bf16.msra.mxu0 %v477
    %500 = vmatprep.subr.bf16.mxu0 0
    %501 = vmatpush1.bf16.msra.mxu0 %v478
    %502 = vmatprep.subr.bf16.mxu0 0
    %503 = vmatpush1.bf16.msra.mxu0 %v479
    %504 = vmatprep.subr.bf16.mxu0 0
    %505 = vmatpush1.bf16.msra.mxu0 0
    %506 = vmatprep.subr.bf16.mxu0 0
    %507 = vmatpush1.bf16.msra.mxu0 0
    %508 = vmatprep.subr.bf16.mxu0 0
    %509 = vmatpush1.bf16.msra.mxu0 0
    %510 = vmatprep.subr.bf16.mxu0 0
    %511 = vmatpush1.bf16.msra.mxu0 0
    %512 = vmatprep.subr.bf16.mxu0 0
    %513 = vmatpush1.bf16.msra.mxu0 0
    %514 = vmatprep.subr.bf16.mxu0 0
    %515 = vmatpush1.bf16.msra.mxu0 0
    %516 = vmatprep.subr.bf16.mxu0 0
    %517 = vmatpush1.bf16.msra.mxu0 0
    %518 = vmatprep.subr.bf16.mxu0 0
    %519 = vmatpush1.bf16.msra.mxu0 0
    %520 = vmatprep.mubr.bf16.mxu0 0
    %521 = vmatmul.mubr.bf16.gmra.mrb[0].mxu0 %v438
    %v522 = vpop.f32.mrb[0].mxu0
    %v523 = vadd.f32 0.0, %v522
    %v524 = vpop.f32.mrb[0].mxu0
    %v525 = vpop.f32.mrb[0].mxu0
    %v526 = vadd.f32 0.0, %v525
    %v527 = vpop.f32.mrb[0].mxu0
    %528 = vdwg.mxu0
    %v529 = vmul.f32 %v336, 2.0
    %v531 = vlaneseq
    %v532 = vshrl.u32 %v531, 7
    %v533 = vsub.s32 0, %v532
    %v534 = vrot.slane %v529, %v533
    %v536 = vadd.f32 %v523, %v534
    %v537 = vadd.f32 %v526, %v534
    %v538 = vmul.f32 %v536, %v309
    %v539 = vmul.f32 %v537, %v310
    %v540 = vmax.f32 %v538, 0.0
    %v541 = vmax.f32 %v539, 0.0
    %542 = vst [vmem:[#allocation10] sm:$0xff] %v540
    %543 = vst [vmem:[#allocation10 + $0x8] sm:$0xff] %v541
    %v544 = vld [vmem:[#allocation8] sm:$0xf]
    %v545 = vld [vmem:[#allocation8 + $0x4] sm:$0xf]
    %v546 = vld [vmem:[#allocation8 + $0x8] sm:$0xf]
    %v547 = vld [vmem:[#allocation8 + $0xc] sm:$0xf]
    %v548 = vld [vmem:[#allocation8 + $0x10] sm:$0xf]
    %v549 = vld [vmem:[#allocation8 + $0x14] sm:$0xf]
    %v550 = vld [vmem:[#allocation8 + $0x18] sm:$0xf]
    %v551 = vld [vmem:[#allocation8 + $0x1c] sm:$0xf]
    %v552 = vld [vmem:[#allocation8 + $0x20] sm:$0xf]
    %v553 = vld [vmem:[#allocation8 + $0x24] sm:$0xf]
    %v554 = vld [vmem:[#allocation8 + $0x28] sm:$0xf]
    %v555 = vld [vmem:[#allocation8 + $0x2c] sm:$0xf]
    %v556 = vld [vmem:[#allocation8 + $0x30] sm:$0xf]
    %v557 = vld [vmem:[#allocation8 + $0x34] sm:$0xf]
    %v558 = vld [vmem:[#allocation8 + $0x38] sm:$0xf]
    %v559 = vld [vmem:[#allocation8 + $0x3c] sm:$0xf]
    %v560 = vld [vmem:[%s5] sm:$0x1]
    %v561 = vpack.c.bf16 %v540, %v540
    %v562 = vpack.c.bf16 %v541, %v541
    %v564 = vsel %vm342, %v561, 0
    %566 = vmatprep.subr.bf16.mxu0 0
    %567 = vmatpush1.bf16.msra.mxu0 %v564
    %568 = vmatprep.subr.bf16.mxu0 0
    %569 = vmatpush1.bf16.msra.mxu0 0
    %570 = vmatprep.subr.bf16.mxu0 0
    %571 = vmatpush1.bf16.msra.mxu0 0
    %572 = vmatprep.subr.bf16.mxu0 0
    %573 = vmatpush1.bf16.msra.mxu0 0
    %574 = vmatprep.subr.bf16.mxu0 0
    %575 = vmatpush1.bf16.msra.mxu0 0
    %576 = vmatprep.subr.bf16.mxu0 0
    %577 = vmatpush1.bf16.msra.mxu0 0
    %578 = vmatprep.subr.bf16.mxu0 0
    %579 = vmatpush1.bf16.msra.mxu0 0
    %580 = vmatprep.subr.bf16.mxu0 0
    %581 = vmatpush1.bf16.msra.mxu0 0
    %582 = vmatprep.subr.bf16.mxu0 0
    %583 = vmatpush1.bf16.msra.mxu0 0
    %584 = vmatprep.subr.bf16.mxu0 0
    %585 = vmatpush1.bf16.msra.mxu0 0
    %586 = vmatprep.subr.bf16.mxu0 0
    %587 = vmatpush1.bf16.msra.mxu0 0
    %588 = vmatprep.subr.bf16.mxu0 0
    %589 = vmatpush1.bf16.msra.mxu0 0
    %590 = vmatprep.subr.bf16.mxu0 0
    %591 = vmatpush1.bf16.msra.mxu0 0
    %592 = vmatprep.subr.bf16.mxu0 0
    %593 = vmatpush1.bf16.msra.mxu0 0
    %594 = vmatprep.subr.bf16.mxu0 0
    %595 = vmatpush1.bf16.msra.mxu0 0
    %596 = vmatprep.subr.bf16.mxu0 0
    %597 = vmatpush1.bf16.msra.mxu0 0
    %598 = vmatprep.mubr.bf16.mxu0 0
    %599 = vmatmul.mubr.bf16.gmra.mrb[0].mxu0 %v340
    %v600 = vpop.f32.mrb[0].mxu0
    %v601 = vadd.f32 %v540, %v600
    %v602 = vpop.f32.mrb[0].mxu0
    %v603 = vpop.f32.mrb[0].mxu0
    %v604 = vpop.f32.mrb[0].mxu0
    %605 = vdwg.mxu0
    %v607 = vsel %vm342, %v562, 0
    %609 = vmatprep.subr.bf16.mxu0 0
    %610 = vmatpush1.bf16.msra.mxu0 %v607
    %611 = vmatprep.subr.bf16.mxu0 0
    %612 = vmatpush1.bf16.msra.mxu0 0
    %613 = vmatprep.subr.bf16.mxu0 0
    %614 = vmatpush1.bf16.msra.mxu0 0
    %615 = vmatprep.subr.bf16.mxu0 0
    %616 = vmatpush1.bf16.msra.mxu0 0
    %617 = vmatprep.subr.bf16.mxu0 0
    %618 = vmatpush1.bf16.msra.mxu0 0
    %619 = vmatprep.subr.bf16.mxu0 0
    %620 = vmatpush1.bf16.msra.mxu0 0
    %621 = vmatprep.subr.bf16.mxu0 0
    %622 = vmatpush1.bf16.msra.mxu0 0
    %623 = vmatprep.subr.bf16.mxu0 0
    %624 = vmatpush1.bf16.msra.mxu0 0
    %625 = vmatprep.subr.bf16.mxu0 0
    %626 = vmatpush1.bf16.msra.mxu0 0
    %627 = vmatprep.subr.bf16.mxu0 0
    %628 = vmatpush1.bf16.msra.mxu0 0
    %629 = vmatprep.subr.bf16.mxu0 0
    %630 = vmatpush1.bf16.msra.mxu0 0
    %631 = vmatprep.subr.bf16.mxu0 0
    %632 = vmatpush1.bf16.msra.mxu0 0
    %633 = vmatprep.subr.bf16.mxu0 0
    %634 = vmatpush1.bf16.msra.mxu0 0
    %635 = vmatprep.subr.bf16.mxu0 0
    %636 = vmatpush1.bf16.msra.mxu0 0
    %637 = vmatprep.subr.bf16.mxu0 0
    %638 = vmatpush1.bf16.msra.mxu0 0
    %639 = vmatprep.subr.bf16.mxu0 0
    %640 = vmatpush1.bf16.msra.mxu0 0
    %641 = vmatprep.mubr.bf16.mxu0 0
    %642 = vmatmul.mubr.bf16.gmra.mrb[0].mxu0 %v387
    %v643 = vpop.f32.mrb[0].mxu0
    %v644 = vadd.f32 %v541, %v643
    %v645 = vpop.f32.mrb[0].mxu0
    %v646 = vpop.f32.mrb[0].mxu0
    %v647 = vpop.f32.mrb[0].mxu0
    %648 = vdwg.mxu0
    %v649 = vpack.c.bf16 %v601, %v601
    %v650 = vpack.c.bf16 %v644, %v644
    %v653 = vunpack.c.l.b16 %v649
    %v654 = vunpack.c.l.b16 %v650
    %v655 = vpack.c.b16 %v654, %v653
    %v673 = vunpack.c.l.b16 %v544
    %v674 = vunpack.c.l.b16 %v545
    %v675 = vunpack.c.l.b16 %v546
    %v676 = vunpack.c.l.b16 %v547
    %v677 = vunpack.c.l.b16 %v548
    %v678 = vunpack.c.l.b16 %v549
    %v679 = vunpack.c.l.b16 %v550
    %v680 = vunpack.c.l.b16 %v551
    %v681 = vunpack.c.l.b16 %v552
    %v682 = vunpack.c.l.b16 %v553
    %v683 = vunpack.c.l.b16 %v554
    %v684 = vunpack.c.l.b16 %v555
    %v685 = vunpack.c.l.b16 %v556
    %v686 = vunpack.c.l.b16 %v557
    %v687 = vunpack.c.l.b16 %v558
    %v688 = vunpack.c.l.b16 %v559
    %v689 = vpack.c.b16 %v674, %v673
    %v690 = vpack.c.b16 %v676, %v675
    %v691 = vpack.c.b16 %v678, %v677
    %v692 = vpack.c.b16 %v680, %v679
    %v693 = vpack.c.b16 %v682, %v681
    %v694 = vpack.c.b16 %v684, %v683
    %v695 = vpack.c.b16 %v686, %v685
    %v696 = vpack.c.b16 %v688, %v687
    %705 = vmatprep.subr.bf16.mxu0 0
    %706 = vmatpush1.bf16.msra.mxu0 %v689
    %707 = vmatprep.subr.bf16.mxu0 0
    %708 = vmatpush1.bf16.msra.mxu0 %v690
    %709 = vmatprep.subr.bf16.mxu0 0
    %710 = vmatpush1.bf16.msra.mxu0 %v691
    %711 = vmatprep.subr.bf16.mxu0 0
    %712 = vmatpush1.bf16.msra.mxu0 %v692
    %713 = vmatprep.subr.bf16.mxu0 0
    %714 = vmatpush1.bf16.msra.mxu0 %v693
    %715 = vmatprep.subr.bf16.mxu0 0
    %716 = vmatpush1.bf16.msra.mxu0 %v694
    %717 = vmatprep.subr.bf16.mxu0 0
    %718 = vmatpush1.bf16.msra.mxu0 %v695
    %719 = vmatprep.subr.bf16.mxu0 0
    %720 = vmatpush1.bf16.msra.mxu0 %v696
    %721 = vmatprep.subr.bf16.mxu0 0
    %722 = vmatpush1.bf16.msra.mxu0 0
    %723 = vmatprep.subr.bf16.mxu0 0
    %724 = vmatpush1.bf16.msra.mxu0 0
    %725 = vmatprep.subr.bf16.mxu0 0
    %726 = vmatpush1.bf16.msra.mxu0 0
    %727 = vmatprep.subr.bf16.mxu0 0
    %728 = vmatpush1.bf16.msra.mxu0 0
    %729 = vmatprep.subr.bf16.mxu0 0
    %730 = vmatpush1.bf16.msra.mxu0 0
    %731 = vmatprep.subr.bf16.mxu0 0
    %732 = vmatpush1.bf16.msra.mxu0 0
    %733 = vmatprep.subr.bf16.mxu0 0
    %734 = vmatpush1.bf16.msra.mxu0 0
    %735 = vmatprep.subr.bf16.mxu0 0
    %736 = vmatpush1.bf16.msra.mxu0 0
    %737 = vmatprep.mubr.bf16.mxu0 0
    %738 = vmatmul.mubr.bf16.gmra.mrb[0].mxu0 %v655
    %v739 = vpop.f32.mrb[0].mxu0
    %v740 = vadd.f32 0.0, %v739
    %v741 = vpop.f32.mrb[0].mxu0
    %v742 = vpop.f32.mrb[0].mxu0
    %v743 = vadd.f32 0.0, %v742
    %v744 = vpop.f32.mrb[0].mxu0
    %745 = vdwg.mxu0
    %v746 = vmul.f32 %v560, 2.0
    %v748 = vlaneseq
    %v749 = vshrl.u32 %v748, 7
    %v750 = vsub.s32 0, %v749
    %v751 = vrot.slane %v746, %v750
    %v753 = vadd.f32 %v740, %v751
    %v754 = vadd.f32 %v743, %v751
    %v755 = vmul.f32 %v753, %v309
    %v756 = vmul.f32 %v754, %v310
    %v757 = vmax.f32 %v755, 0.0
    %v758 = vmax.f32 %v756, 0.0
    %759 = vst [vmem:[#allocation11] sm:$0xff] %v757
    %760 = vst [vmem:[#allocation11 + $0x8] sm:$0xff] %v758
    // Predicated region
    $region42: #{tpu_custom_call.1} parent=1 // pred_check
      _
    $region43: #{tpu_custom_call.1} parent=1 // pred_check_branch
      %762 = sbr.rel (0) target = $region45
    $region44: #{tpu_custom_call.1} parent=1 // pred_region
      %s764 = ssub.s32 256, 256
      %765 = vsyncadd [#allocation4], %s764
      %s766 = sshll.u32 [#allocation10], 4
      %s767 = int_to_ptr.vmem [resolvable:$true] %s766
      %772 = dma.vmem_to_hbm [thread:$0]  %s767, 256, %s6, [#allocation4], 128, 128, 8
    $region45: #{tpu_custom_call.1} parent=1 // pred_fallthru
      _
    // Predicated region
    $region46: #{tpu_custom_call.1} parent=1 // pred_check
      _
    $region47: #{tpu_custom_call.1} parent=1 // pred_check_branch
      %774 = sbr.rel (0) target = $region49
    $region48: #{tpu_custom_call.1} parent=1 // pred_region
      %s776 = ssub.s32 256, 256
      %777 = vsyncadd [#allocation12], %s776
      %s778 = sshll.u32 [#allocation11], 4
      %s779 = int_to_ptr.vmem [resolvable:$true] %s778
      %784 = dma.vmem_to_hbm [thread:$0]  %s779, 256, %s7, [#allocation12], 128, 128, 8
    $region49: #{tpu_custom_call.1} parent=1 // pred_fallthru
      _
    // Predicated region
    $region50: #{tpu_custom_call.1} parent=1 // pred_check
      _
    $region51: #{tpu_custom_call.1} parent=1 // pred_check_branch
      %786 = sbr.rel (0) target = $region53
    $region52: #{tpu_custom_call.1} parent=1 // pred_region
      _
    $region53: #{tpu_custom_call.1} parent=1 // pred_fallthru
      _
    // Predicated region
    $region54: #{tpu_custom_call.1} parent=1 // pred_check
      _
    $region55: #{tpu_custom_call.1} parent=1 // pred_check_branch
      %788 = sbr.rel (0) target = $region57
    $region56: #{tpu_custom_call.1} parent=1 // pred_region
      %789 = dma.done [#allocation4], 256
    $region57: #{tpu_custom_call.1} parent=1 // pred_fallthru
      _
    // Predicated region
    $region58: #{tpu_custom_call.1} parent=1 // pred_check
      _
    $region59: #{tpu_custom_call.1} parent=1 // pred_check_branch
      %791 = sbr.rel (0) target = $region61
    $region60: #{tpu_custom_call.1} parent=1 // pred_region
      %792 = dma.done [#allocation12], 256
    $region61: #{tpu_custom_call.1} parent=1 // pred_fallthru
      _
    // Predicated region
    $region62: #{tpu_custom_call.1} parent=1 // pred_check
      _
    $region63: #{tpu_custom_call.1} parent=1 // pred_check_branch
      %794 = sbr.rel (0) target = $region65
    $region64: #{tpu_custom_call.1} parent=1 // pred_region
      _
    $region65: #{tpu_custom_call.1} parent=1 // pred_fallthru
      _
    %795 = vsyncpa [#allocation3], 1
    %796 = vsyncpa [#allocation6], 1
    %797 = vsyncpa [#allocation9], 1
    %798 = vsyncpa [#allocation4], 1
    %799 = vsyncpa [#allocation12], 1

</llo_original>
